<compile_context>
chip_gen: v6e
topology: v6e:2x2x1
jax: 0.10.0
libtpu: 0.0.40
codegen_flags: <defaults>
</compile_context>

<pallas_src>
import functools

import jax
import jax.numpy as jnp
from jax.experimental import pallas as pl
from jax.experimental.pallas import tpu as pltpu

_LANES = 128  # nodes packed per output row (lane axis)


def har_kernel(x_ref, w_ref, b_ref, out_ref):
    """x_ref: VMEM (R, 384); w_ref: VMEM (384, 128); b_ref: SMEM (1,);
    out_ref: VMEM (R, 128)."""
    x = x_ref[...]
    if x.dtype != jnp.float32:
        x = x.astype(jnp.float32)  # in-kernel upcast (free VPU, hidden under DMA)
    # Structured matmul performs the per-node 3-feature reduction and the
    # lane de-interleave in one MXU op.  If bit-exact f32 reproduction of the
    # torch linear is required and the toolchain truncates f32 MXU operands,
    # add precision=jax.lax.Precision.HIGHEST here.
    h = jnp.dot(x, w_ref[...], preferred_element_type=jnp.float32)
    out_ref[...] = jnp.maximum(h + b_ref[0], 0.0).astype(out_ref.dtype)


def _round_up(x, m):
    return ((x + m - 1) // m) * m


@functools.partial(jax.jit, static_argnames=("block_rows",))
def har_forward(node_feat, adj, weight, bias, *, block_rows=2048):
    """node_feat: (B, N, 3); adj: (B, N, N) [unused by HAR];
    weight: (1, 3) torch nn.Linear layout; bias: (1,).  Returns (B, N) f32."""
    del adj  # HAR.forward never touches adj; do not DMA it.
    B, N, F = node_feat.shape
    assert F == 3
    M = B * N

    # Zero-copy reinterpretation of the contiguous (M, 3) buffer as
    # (Mb, 3*128): 128 nodes per row, features interleaved along lanes.
    M_pad = _round_up(M, _LANES)
    x2 = node_feat.reshape(M, F)                      # free (contiguous)
    if M_pad != M:
        # Only for M not a multiple of 128 (one extra HBM pass over the input).
        x2 = jnp.pad(x2, ((0, M_pad - M), (0, 0)))
    Mb = M_pad // _LANES
    x_view = x2.reshape(Mb, F * _LANES)               # free bitcast-reshape

    # Tiny structured projection matrix: W3[3k+f, k] = w[f]  (384x128, 192 KB).
    w = weight.reshape(F).astype(jnp.float32)
    W3 = jnp.kron(jnp.eye(_LANES, dtype=jnp.float32), w.reshape(F, 1))
    b = bias.reshape(1).astype(jnp.float32)

    # Rows (of 128 nodes) per grid step.  2048 rows -> 3 MiB in + 1 MiB out
    # per buffer; double-buffered ~8.5 MiB VMEM (fits v5e's 16 MiB default).
    R = min(block_rows, Mb)
    grid = (pl.cdiv(Mb, R),)

    out = pl.pallas_call(
        har_kernel,
        out_shape=jax.ShapeDtypeStruct((Mb, _LANES), jnp.float32),
        grid_spec=pltpu.PrefetchScalarGridSpec(
            num_scalar_prefetch=0,
            grid=grid,
            in_specs=[
                pl.BlockSpec((R, F * _LANES), lambda i: (i, 0)),        # activations
                pl.BlockSpec((F * _LANES, _LANES), lambda i: (0, 0)),   # W3 (resident)
                pl.BlockSpec(memory_space=pltpu.MemorySpace.SMEM),      # bias scalar
            ],
            out_specs=pl.BlockSpec((R, _LANES), lambda i: (i, 0)),
        ),
        compiler_params=pltpu.CompilerParams(
            dimension_semantics=("parallel",)),
    )(x_view, W3, b)

    out_flat = out.reshape(M_pad)
    if M_pad != M:
        out_flat = out_flat[:M]                       # no-op when M is aligned
    return out_flat.reshape(B, N)


def reference_forward(node_feat, adj, weight, bias):
    """Pure-JAX reference matching the PyTorch HAR semantics."""
    del adj
    h1 = node_feat @ weight.T + bias                  # (B, N, 1)
    return jax.nn.relu(h1)[..., 0]                    # (B, N)


def _make_inputs(key, B, N):
    """Deterministic inputs on a dyadic grid so every product / partial sum is
    exactly representable in bf16 and f32 -> the check is precision-mode
    independent while still exercising layout, bias and ReLU."""
    k1, k2, k3, k4 = jax.random.split(key, 4)
    node_feat = jax.random.randint(k1, (B, N, 3), -8, 9).astype(jnp.float32) * 0.25
    adj_raw = jax.random.uniform(k2, (B, N, N), jnp.float32)
    adj = adj_raw / jnp.sum(adj_raw, axis=-1, keepdims=True)   # unused by HAR
    weight = jax.random.randint(k3, (1, 3), -4, 5).astype(jnp.float32) * 0.125
    bias = jax.random.randint(k4, (1,), -4, 5).astype(jnp.float32) * 0.125
    return node_feat, adj, weight, bias


if __name__ == "__main__":
    key = jax.random.PRNGKey(0)
    k_small, k_multi, k_ragged = jax.random.split(key, 3)

    # 1) Small shape matching the module's intended use (B=2, N=16).
    node_feat, adj, weight, bias = _make_inputs(k_small, 2, 16)
    out = jax.block_until_ready(har_forward(node_feat, adj, weight, bias))
    ref = reference_forward(node_feat, adj, weight, bias)
    assert out.shape == (2, 16)
    assert jnp.allclose(out, ref, atol=1e-6), (
        f"small: max err {jnp.max(jnp.abs(out - ref))}")

    # 2) Larger 128-aligned shape with a small block_rows to exercise the
    #    multi-step, zero-copy pipelined path (Mb=32, grid=4).
    node_feat, adj, weight, bias = _make_inputs(k_multi, 4, 1024)
    out = jax.block_until_ready(
        har_forward(node_feat, adj, weight, bias, block_rows=8))
    ref = reference_forward(node_feat, adj, weight, bias)
    assert jnp.allclose(out, ref, atol=1e-6), (
        f"multi-block: max err {jnp.max(jnp.abs(out - ref))}")

    # 3) Ragged (non-multiple-of-128) node count to exercise the pad path.
    node_feat, adj, weight, bias = _make_inputs(k_ragged, 3, 50)
    out = jax.block_until_ready(har_forward(node_feat, adj, weight, bias))
    ref = reference_forward(node_feat, adj, weight, bias)
    assert out.shape == (3, 50)
    assert jnp.allclose(out, ref, atol=1e-6), (
        f"ragged: max err {jnp.max(jnp.abs(out - ref))}")

    print("KERNEL_OK")
</pallas_src>

<mosaic_0001>
module attributes {stable_mosaic.version = 11 : i64} {
  func.func @har_kernel(%arg0: i32, %arg1: memref<1x384xf32, #tpu.memory_space<vmem>>, %arg2: memref<384x128xf32, #tpu.memory_space<vmem>>, %arg3: memref<1xf32, #tpu.memory_space<smem>>, %arg4: memref<1x128xf32, #tpu.memory_space<vmem>>) attributes {dimension_semantics = [#tpu.dimension_semantics<parallel>], iteration_bounds = array<i64: 1>, scalar_prefetch = 0 : i64, scratch_operands = 0 : i64, tpu.core_type = #tpu.core_type<tc>, window_params = [{transform_indices = @transform_0, window_bounds = array<i64: 1, 384>}, {pipeline_mode = #tpu.pipeline_mode<synchronous>, transform_indices = @transform_1, window_bounds = array<i64: 384, 128>}, {transform_indices = @transform_2, window_bounds = array<i64: 1>}, {transform_indices = @transform_3, window_bounds = array<i64: 1, 128>}]} {
    %c0 = arith.constant 0 : index
    %c0_0 = arith.constant 0 : index
    %0 = vector.load %arg1[%c0, %c0_0] : memref<1x384xf32, #tpu.memory_space<vmem>>, vector<1x384xf32>
    %c0_1 = arith.constant 0 : index
    %c0_2 = arith.constant 0 : index
    %1 = vector.load %arg2[%c0_1, %c0_2] : memref<384x128xf32, #tpu.memory_space<vmem>>, vector<384x128xf32>
    %cst = arith.constant dense<0.000000e+00> : vector<1x128xf32>
    %2 = tpu.matmul %0, %1, %cst {dimension_numbers = #tpu.dot_dimension_numbers<[1], [0], [0], [1], [0, 0, 1, 1], [], []>} : vector<1x384xf32>, vector<384x128xf32>, vector<1x128xf32> -> vector<1x128xf32>
    %c0_3 = arith.constant 0 : index
    %3 = memref.load %arg3[%c0_3] : memref<1xf32, #tpu.memory_space<smem>>
    %4 = vector.broadcast %3 : f32 to vector<1x128xf32>
    %5 = arith.addf %2, %4 : vector<1x128xf32>
    %cst_4 = arith.constant 0.000000e+00 : f32
    %6 = vector.broadcast %cst_4 : f32 to vector<1x128xf32>
    %7 = arith.maximumf %5, %6 : vector<1x128xf32>
    %c0_5 = arith.constant 0 : index
    %c0_6 = arith.constant 0 : index
    %8 = vector.load %arg4[%c0_5, %c0_6] : memref<1x128xf32, #tpu.memory_space<vmem>>, vector<1x128xf32>
    tpu.vector_store %arg4[%c0_5, %c0_6], %7 {strides = array<i32>} : memref<1x128xf32, #tpu.memory_space<vmem>>, vector<1x128xf32>,
    return
  }
  func.func @transform_0(%arg0: i32) -> (i32, i32) {
    %c0_i32 = arith.constant 0 : i32
    %c0_i32_0 = arith.constant 0 : i32
    return %arg0, %c0_i32 : i32, i32
  }
  func.func @transform_1(%arg0: i32) -> (i32, i32) {
    %c0_i32 = arith.constant 0 : i32
    %c0_i32_0 = arith.constant 0 : i32
    %c0_i32_1 = arith.constant 0 : i32
    return %c0_i32, %c0_i32_0 : i32, i32
  }
  func.func @transform_2(%arg0: i32) -> i32 {
    %c0_i32 = arith.constant 0 : i32
    %c0_i32_0 = arith.constant 0 : i32
    return %c0_i32 : i32
  }
  func.func @transform_3(%arg0: i32) -> (i32, i32) {
    %c0_i32 = arith.constant 0 : i32
    %c0_i32_0 = arith.constant 0 : i32
    return %arg0, %c0_i32 : i32, i32
  }
}

</mosaic_0001>

<llo_original>
// kernel: har_forward.1
$region0: #{har_forward.1}
  #allocation0 [shape = 'u32[]', space=smem, size = 0x4, offset = 0x4, fixed_abs, tag = 'smem constant byte address 0x4 - core index']
  #allocation1 [shape = 'u32[144,128]{1,0:T(1,128)}', space=vmem, size = 0x12000, scoped, tag = 'internal scratch']
  #allocation2 [shape = 'f32[1]{0:T(128)S(6)}', space=smem, size = 0x200, scoped, tag = 'scoped memory for har_forward.1']
  %s0 = inlined_call_operand.vmem [shape: f32[1,384], index: 0, kind: input, shape index: {}]
  %s1 = inlined_call_operand.vmem [shape: f32[384,128], index: 1, kind: input, shape index: {}]
  %s2 = inlined_call_operand.<no memory space> [shape: f32[1], index: 2, kind: input, shape index: {}]
  %s3 = inlined_call_operand.vmem [shape: f32[1,128], index: 3, kind: output, shape index: {}]
  %s4 = sld [smem:[#allocation0]]
  $region22: #{har_forward.1} parent=0
    _
  %s6 = ssub.s32 1, %s4
  %s7 = scalar_select 0, %s6, %s4
  %8 = sst [smem:[#allocation2]] %s2
  // Predicated region
  $region2: #{har_forward.1} parent=0 // pred_check
    _
  $region3: #{har_forward.1} parent=0 // pred_check_branch
    %10 = sbr.rel (0) target = $region5
  $region4: #{har_forward.1} parent=0 // pred_region
    _
  $region5: #{har_forward.1} parent=0 // pred_fallthru
    _
  // Predicated region
  $region6: #{har_forward.1} parent=0 // pred_check
    _
  $region7: #{har_forward.1} parent=0 // pred_check_branch
    %12 = sbr.rel (0) target = $region9
  $region8: #{har_forward.1} parent=0 // pred_region
    _
  $region9: #{har_forward.1} parent=0 // pred_fallthru
    _
  // Predicated region
  $region10: #{har_forward.1} parent=0 // pred_check
    _
  $region11: #{har_forward.1} parent=0 // pred_check_branch
    %14 = sbr.rel (0) target = $region13
  $region12: #{har_forward.1} parent=0 // pred_region
    _
  $region13: #{har_forward.1} parent=0 // pred_fallthru
    _
  %v15 = vld [vmem:[%s0] sm:$0x7]
  %v16 = vld [vmem:[%s1] sm:$0xff]
  %v17 = vld [vmem:[%s1 + $0x8] sm:$0xff]
  %v18 = vld [vmem:[%s1 + $0x10] sm:$0xff]
  %v19 = vld [vmem:[%s1 + $0x18] sm:$0xff]
  %v20 = vld [vmem:[%s1 + $0x20] sm:$0xff]
  %v21 = vld [vmem:[%s1 + $0x28] sm:$0xff]
  %v22 = vld [vmem:[%s1 + $0x30] sm:$0xff]
  %v23 = vld [vmem:[%s1 + $0x38] sm:$0xff]
  %v24 = vld [vmem:[%s1 + $0x40] sm:$0xff]
  %v25 = vld [vmem:[%s1 + $0x48] sm:$0xff]
  %v26 = vld [vmem:[%s1 + $0x50] sm:$0xff]
  %v27 = vld [vmem:[%s1 + $0x58] sm:$0xff]
  %v28 = vld [vmem:[%s1 + $0x60] sm:$0xff]
  %v29 = vld [vmem:[%s1 + $0x68] sm:$0xff]
  %v30 = vld [vmem:[%s1 + $0x70] sm:$0xff]
  %v31 = vld [vmem:[%s1 + $0x78] sm:$0xff]
  %v32 = vld [vmem:[%s1 + $0x80] sm:$0xff]
  %v33 = vld [vmem:[%s1 + $0x88] sm:$0xff]
  %v34 = vld [vmem:[%s1 + $0x90] sm:$0xff]
  %v35 = vld [vmem:[%s1 + $0x98] sm:$0xff]
  %v36 = vld [vmem:[%s1 + $0xa0] sm:$0xff]
  %v37 = vld [vmem:[%s1 + $0xa8] sm:$0xff]
  %v38 = vld [vmem:[%s1 + $0xb0] sm:$0xff]
  %v39 = vld [vmem:[%s1 + $0xb8] sm:$0xff]
  %v40 = vld [vmem:[%s1 + $0xc0] sm:$0xff]
  %v41 = vld [vmem:[%s1 + $0xc8] sm:$0xff]
  %v42 = vld [vmem:[%s1 + $0xd0] sm:$0xff]
  %v43 = vld [vmem:[%s1 + $0xd8] sm:$0xff]
  %v44 = vld [vmem:[%s1 + $0xe0] sm:$0xff]
  %v45 = vld [vmem:[%s1 + $0xe8] sm:$0xff]
  %v46 = vld [vmem:[%s1 + $0xf0] sm:$0xff]
  %v47 = vld [vmem:[%s1 + $0xf8] sm:$0xff]
  %v48 = vld [vmem:[%s1 + $0x100] sm:$0xff]
  %v49 = vld [vmem:[%s1 + $0x108] sm:$0xff]
  %v50 = vld [vmem:[%s1 + $0x110] sm:$0xff]
  %v51 = vld [vmem:[%s1 + $0x118] sm:$0xff]
  %v52 = vld [vmem:[%s1 + $0x120] sm:$0xff]
  %v53 = vld [vmem:[%s1 + $0x128] sm:$0xff]
  %v54 = vld [vmem:[%s1 + $0x130] sm:$0xff]
  %v55 = vld [vmem:[%s1 + $0x138] sm:$0xff]
  %v56 = vld [vmem:[%s1 + $0x140] sm:$0xff]
  %v57 = vld [vmem:[%s1 + $0x148] sm:$0xff]
  %v58 = vld [vmem:[%s1 + $0x150] sm:$0xff]
  %v59 = vld [vmem:[%s1 + $0x158] sm:$0xff]
  %v60 = vld [vmem:[%s1 + $0x160] sm:$0xff]
  %v61 = vld [vmem:[%s1 + $0x168] sm:$0xff]
  %v62 = vld [vmem:[%s1 + $0x170] sm:$0xff]
  %v63 = vld [vmem:[%s1 + $0x178] sm:$0xff]
  %s64 = sld [smem:[#allocation2]]
  %v65 = vstv %s64
  %v67 = vlaneseq
  %v68 = vshrl.u32 %v67, 7
  %v69 = vsub.s32 0, %v68
  %v70 = vrot.slane %v15, %v69
  %v71 = vlaneseq
  %v72 = vshrl.u32 %v71, 7
  %v73 = vsub.s32 1, %v72
  %v74 = vrot.slane %v15, %v73
  %v75 = vlaneseq
  %v76 = vshrl.u32 %v75, 7
  %v77 = vsub.s32 2, %v76
  %v78 = vrot.slane %v15, %v77
  %82 = vmatprep.subr.mxu0 0.0
  %83 = vmatpush1.msra.mxu0 %v31
  %84 = vmatprep.subr.mxu0 0.0
  %85 = vmatpush1.msra.mxu0 %v30
  %86 = vmatprep.subr.mxu0 0.0
  %87 = vmatpush1.msra.mxu0 %v29
  %88 = vmatprep.subr.mxu0 0.0
  %89 = vmatpush1.msra.mxu0 %v28
  %90 = vmatprep.subr.mxu0 0.0
  %91 = vmatpush1.msra.mxu0 %v27
  %92 = vmatprep.subr.mxu0 0.0
  %93 = vmatpush1.msra.mxu0 %v26
  %94 = vmatprep.subr.mxu0 0.0
  %95 = vmatpush1.msra.mxu0 %v25
  %96 = vmatprep.subr.mxu0 0.0
  %97 = vmatpush1.msra.mxu0 %v24
  %98 = vmatprep.subr.mxu0 0.0
  %99 = vmatpush1.msra.mxu0 %v23
  %100 = vmatprep.subr.mxu0 0.0
  %101 = vmatpush1.msra.mxu0 %v22
  %102 = vmatprep.subr.mxu0 0.0
  %103 = vmatpush1.msra.mxu0 %v21
  %104 = vmatprep.subr.mxu0 0.0
  %105 = vmatpush1.msra.mxu0 %v20
  %106 = vmatprep.subr.mxu0 0.0
  %107 = vmatpush1.msra.mxu0 %v19
  %108 = vmatprep.subr.mxu0 0.0
  %109 = vmatpush1.msra.mxu0 %v18
  %110 = vmatprep.subr.mxu0 0.0
  %111 = vmatpush1.msra.mxu0 %v17
  %112 = vmatprep.subr.mxu0 0.0
  %113 = vmatpush1.msra.mxu0 %v16
  %114 = vmatprep.subr.mxu0 0.0
  %115 = vmatpush2.msra.mxu0 %v47
  %116 = vmatprep.subr.mxu0 0.0
  %117 = vmatpush2.msra.mxu0 %v46
  %118 = vmatprep.subr.mxu0 0.0
  %119 = vmatpush2.msra.mxu0 %v45
  %120 = vmatprep.subr.mxu0 0.0
  %121 = vmatpush2.msra.mxu0 %v44
  %122 = vmatprep.subr.mxu0 0.0
  %123 = vmatpush2.msra.mxu0 %v43
  %124 = vmatprep.subr.mxu0 0.0
  %125 = vmatpush2.msra.mxu0 %v42
  %126 = vmatprep.subr.mxu0 0.0
  %127 = vmatpush2.msra.mxu0 %v41
  %128 = vmatprep.subr.mxu0 0.0
  %129 = vmatpush2.msra.mxu0 %v40
  %130 = vmatprep.subr.mxu0 0.0
  %131 = vmatpush2.msra.mxu0 %v39
  %132 = vmatprep.subr.mxu0 0.0
  %133 = vmatpush2.msra.mxu0 %v38
  %134 = vmatprep.subr.mxu0 0.0
  %135 = vmatpush2.msra.mxu0 %v37
  %136 = vmatprep.subr.mxu0 0.0
  %137 = vmatpush2.msra.mxu0 %v36
  %138 = vmatprep.subr.mxu0 0.0
  %139 = vmatpush2.msra.mxu0 %v35
  %140 = vmatprep.subr.mxu0 0.0
  %141 = vmatpush2.msra.mxu0 %v34
  %142 = vmatprep.subr.mxu0 0.0
  %143 = vmatpush2.msra.mxu0 %v33
  %144 = vmatprep.subr.mxu0 0.0
  %145 = vmatpush2.msra.mxu0 %v32
  %146 = vmatprep.mubr.f32.mxu0 %v74
  %147 = vmatmul.mubr.f32.gmra.mxu0 %v70
  %v148 = vpop.f32.mrf.mxu0
  %v149 = vadd.f32 %v65, %v148
  %v150 = vpop.f32.mrf.mxu0
  %151 = vdwg.mxu0
  %152 = vmatprep.subr.mxu0 0.0
  %153 = vmatpush1.msra.mxu0 %v63
  %154 = vmatprep.subr.mxu0 0.0
  %155 = vmatpush1.msra.mxu0 %v62
  %156 = vmatprep.subr.mxu0 0.0
  %157 = vmatpush1.msra.mxu0 %v61
  %158 = vmatprep.subr.mxu0 0.0
  %159 = vmatpush1.msra.mxu0 %v60
  %160 = vmatprep.subr.mxu0 0.0
  %161 = vmatpush1.msra.mxu0 %v59
  %162 = vmatprep.subr.mxu0 0.0
  %163 = vmatpush1.msra.mxu0 %v58
  %164 = vmatprep.subr.mxu0 0.0
  %165 = vmatpush1.msra.mxu0 %v57
  %166 = vmatprep.subr.mxu0 0.0
  %167 = vmatpush1.msra.mxu0 %v56
  %168 = vmatprep.subr.mxu0 0.0
  %169 = vmatpush1.msra.mxu0 %v55
  %170 = vmatprep.subr.mxu0 0.0
  %171 = vmatpush1.msra.mxu0 %v54
  %172 = vmatprep.subr.mxu0 0.0
  %173 = vmatpush1.msra.mxu0 %v53
  %174 = vmatprep.subr.mxu0 0.0
  %175 = vmatpush1.msra.mxu0 %v52
  %176 = vmatprep.subr.mxu0 0.0
  %177 = vmatpush1.msra.mxu0 %v51
  %178 = vmatprep.subr.mxu0 0.0
  %179 = vmatpush1.msra.mxu0 %v50
  %180 = vmatprep.subr.mxu0 0.0
  %181 = vmatpush1.msra.mxu0 %v49
  %182 = vmatprep.subr.mxu0 0.0
  %183 = vmatpush1.msra.mxu0 %v48
  %184 = vmatprep.subr.mxu0 0.0
  %185 = vmatpush2.msra.mxu0 0.0
  %186 = vmatprep.subr.mxu0 0.0
  %187 = vmatpush2.msra.mxu0 0.0
  %188 = vmatprep.subr.mxu0 0.0
  %189 = vmatpush2.msra.mxu0 0.0
  %190 = vmatprep.subr.mxu0 0.0
  %191 = vmatpush2.msra.mxu0 0.0
  %192 = vmatprep.subr.mxu0 0.0
  %193 = vmatpush2.msra.mxu0 0.0
  %194 = vmatprep.subr.mxu0 0.0
  %195 = vmatpush2.msra.mxu0 0.0
  %196 = vmatprep.subr.mxu0 0.0
  %197 = vmatpush2.msra.mxu0 0.0
  %198 = vmatprep.subr.mxu0 0.0
  %199 = vmatpush2.msra.mxu0 0.0
  %200 = vmatprep.subr.mxu0 0.0
  %201 = vmatpush2.msra.mxu0 0.0
  %202 = vmatprep.subr.mxu0 0.0
  %203 = vmatpush2.msra.mxu0 0.0
  %204 = vmatprep.subr.mxu0 0.0
  %205 = vmatpush2.msra.mxu0 0.0
  %206 = vmatprep.subr.mxu0 0.0
  %207 = vmatpush2.msra.mxu0 0.0
  %208 = vmatprep.subr.mxu0 0.0
  %209 = vmatpush2.msra.mxu0 0.0
  %210 = vmatprep.subr.mxu0 0.0
  %211 = vmatpush2.msra.mxu0 0.0
  %212 = vmatprep.subr.mxu0 0.0
  %213 = vmatpush2.msra.mxu0 0.0
  %214 = vmatprep.subr.mxu0 0.0
  %215 = vmatpush2.msra.mxu0 0.0
  %216 = vmatprep.mubr.f32.mxu0 0.0
  %217 = vmatmul.mubr.f32.gmra.mxu0 %v78
  %v218 = vpop.f32.mrf.mxu0
  %v219 = vadd.f32 %v149, %v218
  %v220 = vpop.f32.mrf.mxu0
  %221 = vdwg.mxu0
  %v222 = vmax.f32 %v219, 0.0
  %223 = vst [vmem:[%s3] sm:$0x1] %v222
  // Predicated region
  $region14: #{har_forward.1} parent=0 // pred_check
    _
  $region15: #{har_forward.1} parent=0 // pred_check_branch
    %225 = sbr.rel (0) target = $region17
  $region16: #{har_forward.1} parent=0 // pred_region
    _
  $region17: #{har_forward.1} parent=0 // pred_fallthru
    _
  // Predicated region
  $region18: #{har_forward.1} parent=0 // pred_check
    _
  $region19: #{har_forward.1} parent=0 // pred_check_branch
    %227 = sbr.rel (0) target = $region21
  $region20: #{har_forward.1} parent=0 // pred_region
    _
  $region21: #{har_forward.1} parent=0 // pred_fallthru
    _

</llo_original>
